<compile_context>
chip_gen: v5e
topology: v5e:2x2
jax: 0.10.0
libtpu: 0.0.40
codegen_flags: <defaults>
</compile_context>

<pallas_src>
import functools

import jax
import jax.numpy as jnp
from jax.experimental import pallas as pl
from jax.experimental.pallas import tpu as pltpu


def _round_up(x, m):
    return ((x + m - 1) // m) * m


# ---------------------------------------------------------------------------
# Fused kernel: dilated conv (k accumulating MXU dots) + InstanceNorm + PReLU.
# ---------------------------------------------------------------------------
def _conv1dunit_kernel(x_ref, w_ref, p_ref, o_ref, *, k, dila, t_out, eps,
                       compute_dtype):
    # x_ref: (1, ci_p, T_in_p)  zero-padded input slab (conv pad + alignment), per batch
    # w_ref: (k, coT, ci_p)     per-tap conv weights
    # p_ref: (coT, 4)           packed per-channel params [bias, gamma, beta, alpha]
    # o_ref: (1, coT, Ttot)     final output slab
    Ttot = o_ref.shape[2]

    x = x_ref[0].astype(compute_dtype)                      # (ci_p, T_in_p)

    # Dilated conv as k accumulating dots on static lane-shifted slices (no tap stack in HBM).
    acc = None
    for j in range(k):
        xj = x[:, j * dila: j * dila + Ttot]                # (ci_p, Ttot), static slice
        wj = w_ref[j].astype(compute_dtype)                 # (coT, ci_p)
        pj = jnp.dot(wj, xj, preferred_element_type=jnp.float32)
        acc = pj if acc is None else acc + pj
    acc = acc + p_ref[:, 0:1]                               # conv bias (coT, 1)

    # Instance-norm statistics over the valid t_out columns (two-pass variance).
    inv_n = 1.0 / t_out
    if Ttot == t_out:
        mean = jnp.sum(acc, axis=-1, keepdims=True) * inv_n
        diff = acc - mean
    else:
        col = jax.lax.broadcasted_iota(jnp.int32, (1, Ttot), 1)
        mask = (col < t_out).astype(jnp.float32)            # (1, Ttot)
        mean = jnp.sum(acc * mask, axis=-1, keepdims=True) * inv_n
        diff = (acc - mean) * mask
    var = jnp.sum(diff * diff, axis=-1, keepdims=True) * inv_n
    inv_std = jax.lax.rsqrt(var + eps)

    gamma = p_ref[:, 1:2]
    beta = p_ref[:, 2:3]
    alpha = p_ref[:, 3:4]
    scale = gamma * inv_std                                 # fused affine: y*scale + shift
    shift = beta - mean * scale

    z = acc * scale + shift
    o_ref[0] = jnp.where(z > 0.0, z, alpha * z).astype(o_ref.dtype)


# ---------------------------------------------------------------------------
# Wrapper: padding, channel/lane alignment, VMEM-adaptive co tiling, one pallas_call.
# ---------------------------------------------------------------------------
def conv1dunit(x, weight, bias, gamma, beta, alpha, *, k, dila, is_causal,
               eps=1e-5, compute_dtype=jnp.float32):
    """x: (B, ci, T) f32; weight: (co, ci, k). Returns (B, co, T_out)."""
    B, ci, T = x.shape
    co = weight.shape[0]
    halo = (k - 1) * dila

    if is_causal:
        pad_l, pad_r = halo, 0
    else:
        pad_l = pad_r = halo // 2
    t_out = T + pad_l + pad_r - halo                # matches PyTorch Conv1d output length

    # Lane-dense layout: time on lanes (multiple of 128), channels on sublanes (multiple of 8).
    ci_p = _round_up(ci, 8)
    Ttot = _round_up(max(t_out, 1), 128)
    T_in_p = _round_up(Ttot + halo, 128)
    x_slab = ci_p * T_in_p * 4

    # VMEM-adaptive co tile (bounds the resident slab; keeps the fusion within v7x's budget).
    budget = 48 * 1024 * 1024
    def _vmem_estimate(co_tile):
        o_slab = co_tile * Ttot * 4
        w_b = k * co_tile * ci_p * 4
        p_b = co_tile * 128 * 4
        # double-buffered pipeline copies + in-kernel temporaries
        return 2 * (x_slab + o_slab + w_b + p_b) + x_slab + 4 * o_slab + 2 * ci_p * Ttot * 4

    coT = min(_round_up(co, 8), 256)
    while coT > 8 and _vmem_estimate(coT) > budget:
        coT = max(8, ((coT // 2) + 7) // 8 * 8)
    co_p = _round_up(co, coT)
    n_co = co_p // coT
    vmem_limit = int(min(max(_vmem_estimate(coT) + (8 << 20), 32 << 20), 64 << 20))

    # Zero padding: conv pad + channel alignment + time alignment (all zeros -> exact results).
    x_pad = jnp.pad(x, ((0, 0), (0, ci_p - ci), (pad_l, T_in_p - T - pad_l)))

    # Per-tap weights: (k, co_p, ci_p).
    w_p = jnp.pad(weight, ((0, co_p - co), (0, ci_p - ci), (0, 0)))
    w_t = jnp.transpose(w_p, (2, 0, 1))

    # Packed per-channel params: one (co_p, 4) tile = [bias, gamma, beta, alpha].
    padc = (0, co_p - co)
    params = jnp.stack([jnp.pad(bias, padc), jnp.pad(gamma, padc),
                        jnp.pad(beta, padc), jnp.pad(alpha, padc)], axis=1)

    kern = functools.partial(_conv1dunit_kernel, k=k, dila=dila, t_out=t_out,
                             eps=eps, compute_dtype=compute_dtype)

    out = pl.pallas_call(
        kern,
        out_shape=jax.ShapeDtypeStruct((B, co_p, Ttot), x.dtype),
        grid_spec=pltpu.PrefetchScalarGridSpec(
            num_scalar_prefetch=0,
            grid=(B, n_co),
            in_specs=[
                pl.BlockSpec((1, ci_p, T_in_p), lambda b, c: (b, 0, 0)),
                pl.BlockSpec((k, coT, ci_p), lambda b, c: (0, c, 0)),
                pl.BlockSpec((coT, 4), lambda b, c: (c, 0)),
            ],
            out_specs=pl.BlockSpec((1, coT, Ttot), lambda b, c: (b, c, 0)),
        ),
        compiler_params=pltpu.CompilerParams(
            dimension_semantics=("parallel", "parallel"),
            vmem_limit_bytes=vmem_limit),
    )(x_pad, w_t, params)

    return out[:, :co, :t_out]


# ---------------------------------------------------------------------------
# Pure-JAX reference (mirrors the PyTorch module) for sanity checking.
# ---------------------------------------------------------------------------
def _reference(x, weight, bias, gamma, beta, alpha, *, k, dila, is_causal,
               eps=1e-5):
    halo = (k - 1) * dila
    if is_causal:
        pad = (halo, 0)
    else:
        pad = (halo // 2, halo // 2)
    xp = jnp.pad(x, ((0, 0), (0, 0), pad))
    t_out = xp.shape[2] - halo
    acc = None
    for j in range(k):
        x_tap = xp[:, :, j * dila: j * dila + t_out]
        c = jnp.einsum('oc,bct->bot', weight[:, :, j], x_tap)
        acc = c if acc is None else acc + c
    acc = acc + bias[None, :, None]
    mean = jnp.mean(acc, axis=2, keepdims=True)
    var = jnp.mean((acc - mean) ** 2, axis=2, keepdims=True)
    y = (acc - mean) / jnp.sqrt(var + eps)
    y = y * gamma[None, :, None] + beta[None, :, None]
    return jnp.where(y > 0, y, alpha[None, :, None] * y)


if __name__ == "__main__":
    # Module hyper-params (small, synthetic): ci=4, co=8, k=3, dila=2.
    B, ci, co, T = 2, 4, 8, 16
    k, dila = 3, 2

    key = jax.random.PRNGKey(0)
    kx, kw, kb, kg, kbe, ka = jax.random.split(key, 6)

    x = jax.random.normal(kx, (B, ci, T), dtype=jnp.float32)
    weight = jax.random.normal(kw, (co, ci, k), dtype=jnp.float32) * 0.2
    bias = jax.random.normal(kb, (co,), dtype=jnp.float32) * 0.1
    gamma = 1.0 + 0.1 * jax.random.normal(kg, (co,), dtype=jnp.float32)
    beta = 0.1 * jax.random.normal(kbe, (co,), dtype=jnp.float32)
    alpha = jnp.full((co,), 0.25, dtype=jnp.float32)        # nn.PReLU default init

    for is_causal in (True, False):
        out = conv1dunit(x, weight, bias, gamma, beta, alpha,
                         k=k, dila=dila, is_causal=is_causal)
        out = jax.block_until_ready(out)
        ref = _reference(x, weight, bias, gamma, beta, alpha,
                         k=k, dila=dila, is_causal=is_causal)
        assert out.shape == ref.shape
        assert jnp.max(jnp.abs(out - ref)) < 1e-3, float(jnp.max(jnp.abs(out - ref)))

    print("KERNEL_OK")
</pallas_src>

<mosaic_0001>
module attributes {stable_mosaic.version = 11 : i64} {
  func.func @_conv1dunit_kernel(%arg0: i32, %arg1: i32, %arg2: memref<1x8x256xf32, #tpu.memory_space<vmem>>, %arg3: memref<3x8x8xf32, #tpu.memory_space<vmem>>, %arg4: memref<8x4xf32, #tpu.memory_space<vmem>>, %arg5: memref<1x8x128xf32, #tpu.memory_space<vmem>>) attributes {dimension_semantics = [#tpu.dimension_semantics<parallel>, #tpu.dimension_semantics<parallel>], iteration_bounds = array<i64: 2, 1>, scalar_prefetch = 0 : i64, scratch_operands = 0 : i64, tpu.core_type = #tpu.core_type<tc>, window_params = [{transform_indices = @transform_0, window_bounds = array<i64: 1, 8, 256>}, {transform_indices = @transform_1, window_bounds = array<i64: 3, 8, 8>}, {transform_indices = @transform_2, window_bounds = array<i64: 8, 4>}, {transform_indices = @transform_3, window_bounds = array<i64: 1, 8, 128>}]} {
    %c0 = arith.constant 0 : index
    %c0_0 = arith.constant 0 : index
    %c0_1 = arith.constant 0 : index
    %0 = vector.load %arg2[%c0, %c0_0, %c0_1] : memref<1x8x256xf32, #tpu.memory_space<vmem>>, vector<1x8x256xf32>
    %1 = vector.shape_cast %0 : vector<1x8x256xf32> to vector<8x256xf32>
    %2 = vector.extract_strided_slice %1 {offsets = [0, 0], sizes = [8, 128], strides = [1, 1]} : vector<8x256xf32> to vector<8x128xf32>
    %c0_2 = arith.constant 0 : index
    %c0_3 = arith.constant 0 : index
    %c0_4 = arith.constant 0 : index
    %3 = vector.load %arg3[%c0_2, %c0_3, %c0_4] : memref<3x8x8xf32, #tpu.memory_space<vmem>>, vector<1x8x8xf32>
    %4 = vector.shape_cast %3 : vector<1x8x8xf32> to vector<8x8xf32>
    %cst = arith.constant dense<0.000000e+00> : vector<8x128xf32>
    %5 = tpu.matmul %4, %2, %cst {dimension_numbers = #tpu.dot_dimension_numbers<[1], [0], [0], [1], [0, 0, 1, 1], [], []>} : vector<8x8xf32>, vector<8x128xf32>, vector<8x128xf32> -> vector<8x128xf32>
    %6 = vector.extract_strided_slice %1 {offsets = [0, 2], sizes = [8, 128], strides = [1, 1]} : vector<8x256xf32> to vector<8x128xf32>
    %c1 = arith.constant 1 : index
    %c0_5 = arith.constant 0 : index
    %c0_6 = arith.constant 0 : index
    %7 = vector.load %arg3[%c1, %c0_5, %c0_6] : memref<3x8x8xf32, #tpu.memory_space<vmem>>, vector<1x8x8xf32>
    %8 = vector.shape_cast %7 : vector<1x8x8xf32> to vector<8x8xf32>
    %cst_7 = arith.constant dense<0.000000e+00> : vector<8x128xf32>
    %9 = tpu.matmul %8, %6, %cst_7 {dimension_numbers = #tpu.dot_dimension_numbers<[1], [0], [0], [1], [0, 0, 1, 1], [], []>} : vector<8x8xf32>, vector<8x128xf32>, vector<8x128xf32> -> vector<8x128xf32>
    %10 = arith.addf %5, %9 : vector<8x128xf32>
    %11 = vector.extract_strided_slice %1 {offsets = [0, 4], sizes = [8, 128], strides = [1, 1]} : vector<8x256xf32> to vector<8x128xf32>
    %c2 = arith.constant 2 : index
    %c0_8 = arith.constant 0 : index
    %c0_9 = arith.constant 0 : index
    %12 = vector.load %arg3[%c2, %c0_8, %c0_9] : memref<3x8x8xf32, #tpu.memory_space<vmem>>, vector<1x8x8xf32>
    %13 = vector.shape_cast %12 : vector<1x8x8xf32> to vector<8x8xf32>
    %cst_10 = arith.constant dense<0.000000e+00> : vector<8x128xf32>
    %14 = tpu.matmul %13, %11, %cst_10 {dimension_numbers = #tpu.dot_dimension_numbers<[1], [0], [0], [1], [0, 0, 1, 1], [], []>} : vector<8x8xf32>, vector<8x128xf32>, vector<8x128xf32> -> vector<8x128xf32>
    %15 = arith.addf %10, %14 : vector<8x128xf32>
    %c0_11 = arith.constant 0 : index
    %c0_12 = arith.constant 0 : index
    %16 = vector.load %arg4[%c0_11, %c0_12] : memref<8x4xf32, #tpu.memory_space<vmem>>, vector<8x1xf32>
    %17 = vector.broadcast %16 : vector<8x1xf32> to vector<8x128xf32>
    %18 = arith.addf %15, %17 : vector<8x128xf32>
    %19 = tpu.iota {dimensions = array<i32: 1>} : vector<1x128xi32>
    %c16_i32 = arith.constant 16 : i32
    %20 = vector.broadcast %c16_i32 : i32 to vector<1x128xi32>
    %21 = arith.cmpi slt, %19, %20 : vector<1x128xi32>
    %22 = arith.extui %21 : vector<1x128xi1> to vector<1x128xi32>
    %23 = arith.sitofp %22 : vector<1x128xi32> to vector<1x128xf32>
    %24 = vector.broadcast %23 : vector<1x128xf32> to vector<8x128xf32>
    %25 = arith.mulf %18, %24 : vector<8x128xf32>
    %cst_13 = arith.constant dense<0.000000e+00> : vector<8xf32>
    %26 = vector.multi_reduction <add>, %25, %cst_13 [1] : vector<8x128xf32> to vector<8xf32>
    %27 = vector.shape_cast %26 : vector<8xf32> to vector<8x1xf32>
    %cst_14 = arith.constant 6.250000e-02 : f32
    %28 = vector.broadcast %cst_14 : f32 to vector<8x1xf32>
    %29 = arith.mulf %27, %28 : vector<8x1xf32>
    %30 = vector.broadcast %29 : vector<8x1xf32> to vector<8x128xf32>
    %31 = arith.subf %18, %30 : vector<8x128xf32>
    %32 = vector.broadcast %23 : vector<1x128xf32> to vector<8x128xf32>
    %33 = arith.mulf %31, %32 : vector<8x128xf32>
    %34 = arith.mulf %33, %33 : vector<8x128xf32>
    %cst_15 = arith.constant dense<0.000000e+00> : vector<8xf32>
    %35 = vector.multi_reduction <add>, %34, %cst_15 [1] : vector<8x128xf32> to vector<8xf32>
    %36 = vector.shape_cast %35 : vector<8xf32> to vector<8x1xf32>
    %cst_16 = arith.constant 6.250000e-02 : f32
    %37 = vector.broadcast %cst_16 : f32 to vector<8x1xf32>
    %38 = arith.mulf %36, %37 : vector<8x1xf32>
    %cst_17 = arith.constant 9.99999974E-6 : f32
    %39 = vector.broadcast %cst_17 : f32 to vector<8x1xf32>
    %40 = arith.addf %38, %39 : vector<8x1xf32>
    %41 = math.rsqrt %40 : vector<8x1xf32>
    %c0_18 = arith.constant 0 : index
    %c1_19 = arith.constant 1 : index
    %42 = vector.load %arg4[%c0_18, %c1_19] : memref<8x4xf32, #tpu.memory_space<vmem>>, vector<8x1xf32>
    %c0_20 = arith.constant 0 : index
    %c2_21 = arith.constant 2 : index
    %43 = vector.load %arg4[%c0_20, %c2_21] : memref<8x4xf32, #tpu.memory_space<vmem>>, vector<8x1xf32>
    %c0_22 = arith.constant 0 : index
    %c3 = arith.constant 3 : index
    %44 = vector.load %arg4[%c0_22, %c3] : memref<8x4xf32, #tpu.memory_space<vmem>>, vector<8x1xf32>
    %45 = arith.mulf %42, %41 : vector<8x1xf32>
    %46 = arith.mulf %29, %45 : vector<8x1xf32>
    %47 = arith.subf %43, %46 : vector<8x1xf32>
    %48 = vector.broadcast %45 : vector<8x1xf32> to vector<8x128xf32>
    %49 = arith.mulf %18, %48 : vector<8x128xf32>
    %50 = vector.broadcast %47 : vector<8x1xf32> to vector<8x128xf32>
    %51 = arith.addf %49, %50 : vector<8x128xf32>
    %cst_23 = arith.constant 0.000000e+00 : f32
    %52 = vector.broadcast %cst_23 : f32 to vector<8x128xf32>
    %53 = arith.cmpf ogt, %51, %52 : vector<8x128xf32>
    %54 = vector.broadcast %44 : vector<8x1xf32> to vector<8x128xf32>
    %55 = arith.mulf %54, %51 : vector<8x128xf32>
    %56 = arith.select %53, %51, %55 : vector<8x128xi1>, vector<8x128xf32>
    %c0_24 = arith.constant 0 : index
    %c0_25 = arith.constant 0 : index
    %c0_26 = arith.constant 0 : index
    %57 = vector.load %arg5[%c0_24, %c0_25, %c0_26] : memref<1x8x128xf32, #tpu.memory_space<vmem>>, vector<1x8x128xf32>
    %58 = vector.shape_cast %57 : vector<1x8x128xf32> to vector<8x128xf32>
    %59 = vector.shape_cast %56 : vector<8x128xf32> to vector<1x8x128xf32>
    tpu.vector_store %arg5[%c0_24, %c0_25, %c0_26], %59 {strides = array<i32>} : memref<1x8x128xf32, #tpu.memory_space<vmem>>, vector<1x8x128xf32>,
    return
  }
  func.func @transform_0(%arg0: i32, %arg1: i32) -> (i32, i32, i32) {
    %c0_i32 = arith.constant 0 : i32
    %c0_i32_0 = arith.constant 0 : i32
    %c0_i32_1 = arith.constant 0 : i32
    return %arg0, %c0_i32, %c0_i32_0 : i32, i32, i32
  }
  func.func @transform_1(%arg0: i32, %arg1: i32) -> (i32, i32, i32) {
    %c0_i32 = arith.constant 0 : i32
    %c0_i32_0 = arith.constant 0 : i32
    %c0_i32_1 = arith.constant 0 : i32
    return %c0_i32, %arg1, %c0_i32_0 : i32, i32, i32
  }
  func.func @transform_2(%arg0: i32, %arg1: i32) -> (i32, i32) {
    %c0_i32 = arith.constant 0 : i32
    %c0_i32_0 = arith.constant 0 : i32
    return %arg1, %c0_i32 : i32, i32
  }
  func.func @transform_3(%arg0: i32, %arg1: i32) -> (i32, i32, i32) {
    %c0_i32 = arith.constant 0 : i32
    %c0_i32_0 = arith.constant 0 : i32
    return %arg0, %arg1, %c0_i32 : i32, i32, i32
  }
}

</mosaic_0001>

<llo_original>
// kernel: tpu_custom_call.1
$region0: #{tpu_custom_call.1}
  #allocation0 [shape = 'u32[]', space=smem, size = 0x4, offset = 0x4, fixed_abs, tag = 'smem constant byte address 0x4 - core index']
  #allocation1 [shape = 'u32[72,128]{1,0:T(1,128)}', space=vmem, size = 0x9000, scoped, tag = 'internal scratch']
  %s0 = inlined_call_operand.hbm [shape: f32[2,8,256], index: 0, kind: input, shape index: {}]
  %s1 = inlined_call_operand.hbm [shape: f32[3,8,8], index: 1, kind: input, shape index: {}]
  %s2 = inlined_call_operand.vmem [shape: f32[8,4], index: 2, kind: input, shape index: {}]
  %s3 = inlined_call_operand.hbm [shape: f32[2,8,128], index: 3, kind: output, shape index: {}]
  %s4 = sld [smem:[#allocation0]]
  $region53: #{tpu_custom_call.1} parent=0
    _
  %s6 = ssub.s32 1, %s4
  %s7 = scalar_select 0, %s6, %s4
  $region1: #{tpu_custom_call.1} parent=0
    #allocation2 [shape = 'u8[16384]{0}', space=vmem, size = 0x4000, scoped, tag = 'input window, operand 0']
    #allocation3 [shape = 's32[2]{0}', space=sflag, size = 0x8, scoped, tag = 'scoped memory for tpu_custom_call.1']
    #allocation4 [shape = 's32[2]{0}', space=sflag, size = 0x8, scoped, tag = 'scoped memory for tpu_custom_call.1']
    #allocation5 [shape = 'u8[12288]{0}', space=vmem, size = 0x3000, scoped, tag = 'input window, operand 1, single buffered']
    #allocation6 [shape = 's32[1]{0}', space=sflag, size = 0x4, scoped, tag = 'scoped memory for tpu_custom_call.1']
    #allocation7 [shape = 'u8[8192]{0}', space=vmem, size = 0x2000, scoped, tag = 'output window, operand 0']
    %8 = vsyncpa [#allocation3], 0
    %s9 = scalar_lea.sflag [#allocation3], 1
    %10 = vsyncpa %s9, 0
    %11 = vsyncpa [#allocation6], 0
    %12 = vsyncpa [#allocation4], 0
    %s13 = scalar_lea.sflag [#allocation4], 1
    %14 = vsyncpa %s13, 0
    loop: start=0, step=1, limit=4
    $region2: #{tpu_custom_call.1} parent=1 // loop_pre_header
      _
    $region3: #{tpu_custom_call.1} parent=1 // loop_header
      %s16 = sphi 0, %s20
      %p17 = scmp.ge.s32.totalorder %s16, 4
      %s23 = sphi 0, %s35
      %s24 = sphi 0, %s31
      %s25 = sphi 0, %s23
      %s26 = sphi 0, %s24
      %s27 = sphi 0, %s25
      %s28 = sphi 0, %s26
      %s38 = sphi 0, %s40
      %s41 = sphi 0, %s38
      %s42 = sphi 0, %s41
      %s58 = sphi 0, %s42
      %s64 = sphi 0, %s66
      %s67 = sphi 0, %s64
      %s68 = sphi 0, %s67
      %s84 = sphi 0, %s68
      %s90 = sphi 0, %s92
      %s93 = sphi 0, %s90
      %s94 = sphi 0, %s93
      %s110 = sphi 0, %s94
      %s118 = sphi 0, %s120
      %s121 = sphi 0, %s118
      %s122 = sphi 0, %s121
      %s138 = sphi 0, %s122
    $region4: #{tpu_custom_call.1} parent=1 // loop_header_branch
      %19 = sbr.rel (%p17) target = $region8
    $region5: #{tpu_custom_call.1} parent=1 // loop_body
      %s21 = ssub.s32 %s16, 1
      %s22 = ssub.s32 %s16, 2
      %s29 = sadd.s32 1, %s24
      %p30 = scmp.ge.s32.totalorder %s29, 1
      %s31 = scalar_select %p30, 0, %s29
      %s32 = sadd.s32 1, %s23
      %s33 = scalar_select %p30, %s32, %s23
      %p34 = scmp.ge.s32.totalorder %s33, 2
      %s35 = scalar_select %p34, 0, %s33
      %s36 = ssub.s32 %s23, %s35
      %p37 = scmp.eq.s32.totalorder %s36, 0
      %s39 = sadd.s32 %s38, 1
      %s40 = scalar_select %p37, %s38, %s39
      %p43 = pneg %p37
      %p44 = scmp.eq.s32.totalorder %s16, 1
      %p45 = por %p43, %p44
      %p46 = scmp.ne.s32.totalorder %s38, %s41
      %p47 = scmp.eq.s32.totalorder %s16, 0
      %p48 = por %p46, %p47
      %p49 = scmp.ne.s32.totalorder %s38, %s41
      %p50 = scmp.eq.s32.totalorder %s21, 1
      %p51 = por %p49, %p50
      %p52 = scmp.ne.s32.totalorder %s41, %s42
      %p53 = scmp.eq.s32.totalorder %s21, 0
      %p54 = por %p52, %p53
      %p55 = scmp.ne.s32.totalorder %s41, %s42
      %p56 = scmp.eq.s32.totalorder %s22, 1
      %p57 = por %p55, %p56
      %p59 = scmp.ne.s32.totalorder %s42, %s58
      %p60 = scmp.eq.s32.totalorder %s22, 0
      %p61 = por %p59, %p60
      %s62 = ssub.s32 %s24, %s31
      %p63 = scmp.eq.s32.totalorder %s62, 0
      %s65 = sadd.s32 %s64, 1
      %s66 = scalar_select %p63, %s64, %s65
      %p69 = pneg %p63
      %p70 = scmp.eq.s32.totalorder %s16, 1
      %p71 = por %p69, %p70
      %p72 = scmp.ne.s32.totalorder %s64, %s67
      %p73 = scmp.eq.s32.totalorder %s16, 0
      %p74 = por %p72, %p73
      %p75 = scmp.ne.s32.totalorder %s64, %s67
      %p76 = scmp.eq.s32.totalorder %s21, 1
      %p77 = por %p75, %p76
      %p78 = scmp.ne.s32.totalorder %s67, %s68
      %p79 = scmp.eq.s32.totalorder %s21, 0
      %p80 = por %p78, %p79
      %p81 = scmp.ne.s32.totalorder %s67, %s68
      %p82 = scmp.eq.s32.totalorder %s22, 1
      %p83 = por %p81, %p82
      %p85 = scmp.ne.s32.totalorder %s68, %s84
      %p86 = scmp.eq.s32.totalorder %s22, 0
      %p87 = por %p85, %p86
      %s88 = ssub.s32 %s24, %s31
      %p89 = scmp.eq.s32.totalorder %s88, 0
      %s91 = sadd.s32 %s90, 1
      %s92 = scalar_select %p89, %s90, %s91
      %p95 = pneg %p89
      %p96 = scmp.eq.s32.totalorder %s16, 1
      %p97 = por %p95, %p96
      %p98 = scmp.ne.s32.totalorder %s90, %s93
      %p99 = scmp.eq.s32.totalorder %s16, 0
      %p100 = por %p98, %p99
      %p101 = scmp.ne.s32.totalorder %s90, %s93
      %p102 = scmp.eq.s32.totalorder %s21, 1
      %p103 = por %p101, %p102
      %p104 = scmp.ne.s32.totalorder %s93, %s94
      %p105 = scmp.eq.s32.totalorder %s21, 0
      %p106 = por %p104, %p105
      %p107 = scmp.ne.s32.totalorder %s93, %s94
      %p108 = scmp.eq.s32.totalorder %s22, 1
      %p109 = por %p107, %p108
      %p111 = scmp.ne.s32.totalorder %s94, %s110
      %p112 = scmp.eq.s32.totalorder %s22, 0
      %p113 = por %p111, %p112
      %s114 = ssub.s32 %s23, %s35
      %s115 = ssub.s32 %s24, %s31
      %s116 = sor.u32 %s114, %s115
      %p117 = scmp.eq.s32.totalorder %s116, 0
      %s119 = sadd.s32 %s118, 1
      %s120 = scalar_select %p117, %s118, %s119
      %p123 = pneg %p117
      %p124 = scmp.eq.s32.totalorder %s16, 1
      %p125 = por %p123, %p124
      %p126 = scmp.ne.s32.totalorder %s118, %s121
      %p127 = scmp.eq.s32.totalorder %s16, 0
      %p128 = por %p126, %p127
      %p129 = scmp.ne.s32.totalorder %s118, %s121
      %p130 = scmp.eq.s32.totalorder %s21, 1
      %p131 = por %p129, %p130
      %p132 = scmp.ne.s32.totalorder %s121, %s122
      %p133 = scmp.eq.s32.totalorder %s21, 0
      %p134 = por %p132, %p133
      %p135 = scmp.ne.s32.totalorder %s121, %s122
      %p136 = scmp.eq.s32.totalorder %s22, 1
      %p137 = por %p135, %p136
      %p139 = scmp.ne.s32.totalorder %s122, %s138
      %p140 = scmp.eq.s32.totalorder %s22, 0
      %p141 = por %p139, %p140
      %p142 = scmp.le.s32.totalorder 1, %s16
      %p143 = scmp.lt.s32.totalorder %s16, 3
      %p144 = pnand %p142, %p143
      %p145 = pneg %p144
      // Predicated region
      $region9: #{tpu_custom_call.1} parent=5 // pred_check
        _
      $region10: #{tpu_custom_call.1} parent=5 // pred_check_branch
        %147 = sbr.rel (%p144) target = $region12
      $region11: #{tpu_custom_call.1} parent=5 // pred_region
        %s148 = ssub.s32 %s16, 1
        // Predicated region
        $region13: #{tpu_custom_call.1} parent=11 // pred_check
          %p149 = pneg %p80
        $region14: #{tpu_custom_call.1} parent=11 // pred_check_branch
          %151 = sbr.rel (%p149) target = $region16
        $region15: #{tpu_custom_call.1} parent=11 // pred_region
          %153 = vsyncadd [#allocation6], 0
          %s154 = smul.addr %s26, 8
          %s155 = scalar_lea.hbm %s1, %s154
          %s156 = sshll.u32 %s155, 4
          %s157 = int_to_ptr.hbm [resolvable:$true] %s156
          %s158 = sshll.u32 [#allocation5], 4
          %s159 = int_to_ptr.vmem [resolvable:$true] %s158
          %164 = dma.hbm_to_vmem [thread:$0]  %s157, 384, %s159, [#allocation6], 128, 128, 8
        $region16: #{tpu_custom_call.1} parent=11 // pred_fallthru
          _
        // Predicated region
        $region17: #{tpu_custom_call.1} parent=11 // pred_check
          %p165 = pneg %p106
        $region18: #{tpu_custom_call.1} parent=11 // pred_check_branch
          %167 = sbr.rel (%p165) target = $region20
        $region19: #{tpu_custom_call.1} parent=11 // pred_region
          %p168 = scmp.lt.s32.totalorder %s26, 0
          %s169 = scalar_select %p168, %s26, 0
          %s170 = smul.addr %s169, 8
          %s171 = scalar_lea.vmem %s2, %s170
        $region20: #{tpu_custom_call.1} parent=11 // pred_fallthru
          _
      $region12: #{tpu_custom_call.1} parent=5 // pred_fallthru
        _
      %p172 = scmp.lt.s32.totalorder %s16, 2
      // Predicated region
      $region21: #{tpu_custom_call.1} parent=5 // pred_check
        %p173 = pneg %p172
      $region22: #{tpu_custom_call.1} parent=5 // pred_check_branch
        %175 = sbr.rel (%p173) target = $region24
      $region23: #{tpu_custom_call.1} parent=5 // pred_region
        // Predicated region
        $region25: #{tpu_custom_call.1} parent=23 // pred_check
          %p176 = pneg %p48
        $region26: #{tpu_custom_call.1} parent=23 // pred_check_branch
          %178 = sbr.rel (%p176) target = $region28
        $region27: #{tpu_custom_call.1} parent=23 // pred_region
          %s179 = sand.u32 %s38, 1
          %s180 = scalar_lea.sflag [#allocation3], %s179
          %s181 = sand.u32 %s38, 1
          %s182 = smul.addr %s181, 16
          %s183 = scalar_lea.vmem [#allocation2], %s182
          %185 = vsyncadd %s180, 0
          %s186 = smul.addr %s23, 2
          %s187 = smul.addr %s186, 8
          %s188 = scalar_lea.hbm %s0, %s187
          %s190 = sshll.u32 %s188, 4
          %s191 = int_to_ptr.hbm [resolvable:$true] %s190
          %s192 = sshll.u32 %s183, 4
          %s193 = int_to_ptr.vmem [resolvable:$true] %s192
          %195 = dma.hbm_to_vmem [thread:$0]  %s191, 256, %s193, %s180
        $region28: #{tpu_custom_call.1} parent=23 // pred_fallthru
          _
      $region24: #{tpu_custom_call.1} parent=5 // pred_fallthru
        _
      %p196 = scmp.le.s32.totalorder 1, %s16
      %p197 = scmp.lt.s32.totalorder %s16, 3
      %p198 = pnand %p196, %p197
      %p199 = pneg %p198
      // Predicated region
      $region29: #{tpu_custom_call.1} parent=5 // pred_check
        _
      $region30: #{tpu_custom_call.1} parent=5 // pred_check_branch
        %201 = sbr.rel (%p198) target = $region32
      $region31: #{tpu_custom_call.1} parent=5 // pred_region
        %s202 = ssub.s32 %s16, 1
        %s203 = sand.u32 %s41, 1
        %s204 = scalar_lea.sflag [#allocation3], %s203
        %s205 = sand.u32 %s41, 1
        %s206 = smul.addr %s205, 16
        %s207 = scalar_lea.vmem [#allocation2], %s206
        // Predicated region
        $region33: #{tpu_custom_call.1} parent=31 // pred_check
          %p208 = pneg %p54
        $region34: #{tpu_custom_call.1} parent=31 // pred_check_branch
          %210 = sbr.rel (%p208) target = $region36
        $region35: #{tpu_custom_call.1} parent=31 // pred_region
          %212 = dma.done %s204, 256
        $region36: #{tpu_custom_call.1} parent=31 // pred_fallthru
          _
        // Predicated region
        $region37: #{tpu_custom_call.1} parent=31 // pred_check
          %p213 = pneg %p80
        $region38: #{tpu_custom_call.1} parent=31 // pred_check_branch
          %215 = sbr.rel (%p213) target = $region40
        $region39: #{tpu_custom_call.1} parent=31 // pred_region
          %217 = dma.done [#allocation6], 384
        $region40: #{tpu_custom_call.1} parent=31 // pred_fallthru
          _
        %s218 = sand.u32 %s41, 1
        %s219 = scalar_lea.sflag [#allocation3], %s218
        %s220 = sand.u32 %s41, 1
        %s221 = smul.addr %s220, 16
        %s222 = scalar_lea.vmem [#allocation2], %s221
        %p223 = pneg %p54
        %p224 = pneg %p51
        %p225 = pneg %p80
        %p226 = pneg %p77
        %p227 = scmp.lt.s32.totalorder %s26, 0
        %s228 = scalar_select %p227, %s26, 0
        %s229 = smul.addr %s228, 8
        %s230 = scalar_lea.vmem %s2, %s229
        %p231 = pneg %p106
        %p232 = pneg %p103
        %p233 = pneg %p134
        %p234 = pneg %p131
        %s235 = sand.u32 %s121, 1
        %s236 = scalar_lea.sflag [#allocation4], %s235
        %s237 = sand.u32 %s121, 1
        %s238 = smul.addr %s237, 8
        %s239 = scalar_lea.vmem [#allocation7], %s238
        %p240 = scmp.lt.s32.totalorder %s26, 0
        %s241 = scalar_select %p240, %s26, 0
        %s242 = smul.addr %s241, 8
        %s243 = scalar_lea.vmem %s2, %s242
        %v244 = vld [vmem:[%s207] sm:$0xff]
        %v245 = vld [vmem:[%s207 + $0x8] sm:$0xff]
        %v246 = vld [vmem:[#allocation5] sm:$0xff]
        %s247 = scalar_lea.vmem [#allocation5], 8
        %v248 = vld [vmem:[%s247] sm:$0xff]
        %251 = vrot.lane.b32.xlu0 %v244, 126
        %v252 = vpop.permute.xlu0 %251
        %253 = vrot.lane.b32.xlu0 %v245, 126
        %v254 = vpop.permute.xlu0 %253
        %vm255 = vcmask 1031168
        %v256 = vsel %vm255, %v252, %v254
        %vm258 = vcmask 64512
        %v260 = vsel %vm258, %v248, 0
        %262 = vmatpush.msra.mxu0 0.0
        %263 = vmatpush.msra.mxu0 0.0
        %264 = vmatpush.msra.mxu0 0.0
        %265 = vmatpush.msra.mxu0 0.0
        %266 = vmatpush.msra.mxu0 0.0
        %267 = vmatpush.msra.mxu0 0.0
        %268 = vmatpush.msra.mxu0 0.0
        %269 = vmatpush.msra.mxu0 0.0
        %270 = vmatpush.msra.mxu0 0.0
        %271 = vmatpush.msra.mxu0 0.0
        %272 = vmatpush.msra.mxu0 0.0
        %273 = vmatpush.msra.mxu0 0.0
        %274 = vmatpush.msra.mxu0 0.0
        %275 = vmatpush.msra.mxu0 0.0
        %276 = vmatpush.msra.mxu0 0.0
        %277 = vmatpush.msra.mxu0 %v256
        %278 = vmatmul.f32.gmra.mxu0 %v260
        %v279 = vpop.f32.mrf.mxu0
        %v280 = vadd.f32 0.0, %v279
        %281 = vdwg.mxu0
        %v283 = vsel %vm258, %v246, 0
        %285 = vmatpush.msra.mxu0 0.0
        %286 = vmatpush.msra.mxu0 0.0
        %287 = vmatpush.msra.mxu0 0.0
        %288 = vmatpush.msra.mxu0 0.0
        %289 = vmatpush.msra.mxu0 0.0
        %290 = vmatpush.msra.mxu0 0.0
        %291 = vmatpush.msra.mxu0 0.0
        %292 = vmatpush.msra.mxu0 0.0
        %293 = vmatpush.msra.mxu0 0.0
        %294 = vmatpush.msra.mxu0 0.0
        %295 = vmatpush.msra.mxu0 0.0
        %296 = vmatpush.msra.mxu0 0.0
        %297 = vmatpush.msra.mxu0 0.0
        %298 = vmatpush.msra.mxu0 0.0
        %299 = vmatpush.msra.mxu0 0.0
        %300 = vmatpush.msra.mxu0 %v244
        %301 = vmatmul.f32.gmra.mxu0 %v283
        %v302 = vpop.f32.mrf.mxu0
        %v303 = vadd.f32 %v280, %v302
        %304 = vdwg.mxu0
        %s305 = scalar_lea.vmem [#allocation5], 16
        %v306 = vld [vmem:[%s305] sm:$0xff]
        %307 = vrot.lane.b32.xlu0 %v244, 124
        %v308 = vpop.permute.xlu0 %307
        %309 = vrot.lane.b32.xlu0 %v245, 124
        %v310 = vpop.permute.xlu0 %309
        %vm311 = vcmask 1014784
        %v312 = vsel %vm311, %v308, %v310
        %v315 = vsel %vm258, %v306, 0
        %317 = vmatpush.msra.mxu0 0.0
        %318 = vmatpush.msra.mxu0 0.0
        %319 = vmatpush.msra.mxu0 0.0
        %320 = vmatpush.msra.mxu0 0.0
        %321 = vmatpush.msra.mxu0 0.0
        %322 = vmatpush.msra.mxu0 0.0
        %323 = vmatpush.msra.mxu0 0.0
        %324 = vmatpush.msra.mxu0 0.0
        %325 = vmatpush.msra.mxu0 0.0
        %326 = vmatpush.msra.mxu0 0.0
        %327 = vmatpush.msra.mxu0 0.0
        %328 = vmatpush.msra.mxu0 0.0
        %329 = vmatpush.msra.mxu0 0.0
        %330 = vmatpush.msra.mxu0 0.0
        %331 = vmatpush.msra.mxu0 0.0
        %332 = vmatpush.msra.mxu0 %v312
        %333 = vmatmul.f32.gmra.mxu0 %v315
        %v334 = vpop.f32.mrf.mxu0
        %v335 = vadd.f32 0.0, %v334
        %336 = vdwg.mxu0
        %v337 = vadd.f32 %v303, %v335
        %v338 = vld [vmem:[%s243] sm:$0xff]
        %340 = vset.pattern.permute.xlu0 0
        %341 = vperm.xlu0 %340, %v338
        %v342 = vpop.permute.xlu0 %341
        %v344 = vadd.f32 %v337, %v342
        %v345 = vlaneseq
        %v346 = vand.u32 %v345, 127
        %vm347 = vcmp.lt.s32.totalorder %v346, 16
        %v348 = vsel %vm347, 1, 0
        %v349 = vcvt.s32.f32 %v348
        %v350 = vmul.f32 %v344, %v349
        %351 = vadd.xlane.f32.xlu0 %v350
        %v352 = vpop.xlane.xlu0 %351
        %v353 = vmul.f32 %v352, 0.0625
        %v354 = vsub.f32 %v344, %v353
        %v355 = vmul.f32 %v354, %v349
        %v356 = vmul.f32 %v355, %v355
        %357 = vadd.xlane.f32.xlu0 %v356
        %v358 = vpop.xlane.xlu0 %357
        %v359 = vmul.f32 %v358, 0.0625
        %v360 = vadd.f32 %v359, 1e-05
        %v361 = vrsqrt.pop %v360
        %v362 = vmul.f32 %v361, %v360
        %v363 = vmul.f32 %v362, %v361
        %v364 = vmul.f32 0.5, %v363
        %v365 = vsub.f32 1.5, %v364
        %v366 = vmul.f32 %v361, %v365
        %vm367 = vweird.f32 %v360
        %vm368 = vweird.f32 %v361
        %vm369 = vmor %vm367, %vm368
        %v370 = vsel %vm369, %v361, %v366
        %v371 = vmul.f32 %v338, %v370
        %v372 = vmul.f32 %v353, %v371
        %374 = vrot.lane.b32.xlu0 %v372, 1
        %v375 = vpop.permute.xlu0 %374
        %v377 = vsub.f32 %v338, %v375
        %379 = vset.pattern.permute.xlu0 1
        %380 = vperm.xlu0 %379, %v371
        %v381 = vpop.permute.xlu0 %380
        %v383 = vmul.f32 %v344, %v381
        %385 = vset.pattern.permute.xlu0 2
        %386 = vperm.xlu0 %385, %v377
        %v387 = vpop.permute.xlu0 %386
        %v389 = vadd.f32 %v383, %v387
        %vm390 = vcmp.gt.f32.partialorder %v389, 0.0
        %391 = vset.pattern.permute.xlu0 3
        %392 = vperm.xlu0 %391, %v338
        %v393 = vpop.permute.xlu0 %392
        %v395 = vmul.f32 %v393, %v389
        %v396 = vsel %vm390, %v389, %v395
        %397 = vst [vmem:[%s239] sm:$0xff] %v396
        %s398 = sand.u32 %s121, 1
        %s399 = scalar_lea.sflag [#allocation4], %s398
        %s400 = sand.u32 %s121, 1
        %s401 = smul.addr %s400, 8
        %s402 = scalar_lea.vmem [#allocation7], %s401
        // Predicated region
        $region41: #{tpu_custom_call.1} parent=31 // pred_check
          %p403 = pneg %p131
        $region42: #{tpu_custom_call.1} parent=31 // pred_check_branch
          %405 = sbr.rel (%p403) target = $region44
        $region43: #{tpu_custom_call.1} parent=31 // pred_region
          %407 = vsyncadd %s399, 0
          %s408 = sadd.s32 %s26, %s25
          %s409 = smul.addr %s408, 8
          %s410 = scalar_lea.hbm %s3, %s409
          %s412 = sshll.u32 %s402, 4
          %s413 = int_to_ptr.vmem [resolvable:$true] %s412
          %s414 = sshll.u32 %s410, 4
          %s415 = int_to_ptr.hbm [resolvable:$true] %s414
          %417 = dma.vmem_to_hbm [thread:$0]  %s413, 128, %s415, %s399
        $region44: #{tpu_custom_call.1} parent=31 // pred_fallthru
          _
      $region32: #{tpu_custom_call.1} parent=5 // pred_fallthru
        _
      %p418 = scmp.le.s32.totalorder 2, %s16
      // Predicated region
      $region45: #{tpu_custom_call.1} parent=5 // pred_check
        %p419 = pneg %p418
      $region46: #{tpu_custom_call.1} parent=5 // pred_check_branch
        %421 = sbr.rel (%p419) target = $region48
      $region47: #{tpu_custom_call.1} parent=5 // pred_region
        %s422 = ssub.s32 %s16, 2
        // Predicated region
        $region49: #{tpu_custom_call.1} parent=47 // pred_check
          %p423 = pneg %p137
        $region50: #{tpu_custom_call.1} parent=47 // pred_check_branch
          %425 = sbr.rel (%p423) target = $region52
        $region51: #{tpu_custom_call.1} parent=47 // pred_region
          %s426 = sand.u32 %s122, 1
          %s427 = scalar_lea.sflag [#allocation4], %s426
          %s428 = sand.u32 %s122, 1
          %s429 = smul.addr %s428, 8
          %s430 = scalar_lea.vmem [#allocation7], %s429
          %432 = dma.done %s427, 128
        $region52: #{tpu_custom_call.1} parent=47 // pred_fallthru
          _
      $region48: #{tpu_custom_call.1} parent=5 // pred_fallthru
        _
    $region6: #{tpu_custom_call.1} parent=1 // loop_footer
      %s20 = sadd.s32 1, %s16
    $region7: #{tpu_custom_call.1} parent=1 // loop_footer_branch
      %15 = sbr.rel target = $region3
    $region8: #{tpu_custom_call.1} parent=1 // loop_exit
      _
    %433 = vsyncpa [#allocation3], 1
    %s434 = scalar_lea.sflag [#allocation3], 1
    %435 = vsyncpa %s434, 1
    %436 = vsyncpa [#allocation6], 1
    %437 = vsyncpa [#allocation4], 1
    %s438 = scalar_lea.sflag [#allocation4], 1
    %439 = vsyncpa %s438, 1

</llo_original>
